<compile_context>
chip_gen: v7x
topology: tpu7x:2x2x1
jax: 0.10.0
libtpu: 0.0.40
codegen_flags: <defaults>
</compile_context>

<pallas_src>
import math

import jax
import jax.numpy as jnp
from jax.experimental import pallas as pl
from jax.experimental.pallas import tpu as pltpu


def _dma_copy_kernel(x_hbm, o_hbm, sem):
    # Whole-buffer HBM -> HBM copy: one DMA descriptor, no VMEM staging.
    copy = pltpu.make_async_copy(x_hbm, o_hbm, sem)
    copy.start()
    copy.wait()


def _resolve_shape(shape, numel):
    """Resolve a single -1 entry the way torch.reshape does."""
    shape = tuple(int(s) for s in shape)
    if shape.count(-1) > 1:
        raise ValueError("only one dimension can be -1")
    if -1 in shape:
        known = 1
        for s in shape:
            if s != -1:
                known *= s
        if known == 0 or numel % known != 0:
            raise ValueError(f"cannot reshape {numel} elements into {shape}")
        shape = tuple(numel // known if s == -1 else s for s in shape)
    if math.prod(shape) != numel:
        raise ValueError(f"cannot reshape {numel} elements into {shape}")
    return shape


def pallas_reshape(x, shape, use_pallas_kernel=True):
    """Pallas equivalent of Reshape(shape).forward(x) == torch.reshape(x, shape).

    With use_pallas_kernel=False this is the truly optimal (metadata-only)
    implementation: a plain jnp.reshape / bitcast with zero HBM traffic.
    With use_pallas_kernel=True (default here, since a kernel is required) the
    data takes exactly one HBM->HBM DMA pass and the reshape itself remains
    metadata-only glue in the wrapper.
    """
    target = _resolve_shape(shape, x.size)

    # Degenerate cases (empty tensors, 0-d scalars): nothing to DMA.
    if not use_pallas_kernel or x.size == 0 or x.ndim == 0:
        return jnp.reshape(x, target)

    n = x.size
    itemsize = jnp.dtype(x.dtype).itemsize

    # Copy the input buffer (same shape/dtype -> identical HBM layouts, so the
    # DMA is a straight contiguous transfer regardless of alignment), then
    # re-view it with the target shape (pure metadata, no extra HBM pass).
    copied = pl.pallas_call(
        _dma_copy_kernel,
        out_shape=jax.ShapeDtypeStruct(x.shape, x.dtype),
        in_specs=[pl.BlockSpec(memory_space=pl.ANY)],
        out_specs=pl.BlockSpec(memory_space=pl.ANY),
        scratch_shapes=[pltpu.SemaphoreType.DMA],
        cost_estimate=pl.CostEstimate(
            flops=0,
            transcendentals=0,
            bytes_accessed=2 * n * itemsize,
        ),
    )(x)
    return jnp.reshape(copied, target)


class Reshape:
    """Mirror of the PyTorch module's interface."""

    def __init__(self, shape, use_pallas_kernel=True):
        self.shape = shape
        self.use_pallas_kernel = use_pallas_kernel

    def __call__(self, x):
        return pallas_reshape(x, self.shape, self.use_pallas_kernel)


if __name__ == "__main__":
    key = jax.random.PRNGKey(0)
    k1, k2, k3 = jax.random.split(key, 3)

    # Shapes consistent with the module: batch=2, channels=4, spatial=16x16.
    x = jax.random.normal(k1, (2, 4, 16, 16), dtype=jnp.float32)

    # Case 1: flatten the spatial dims.
    mod1 = Reshape((2, 4, 256))
    out1 = jax.block_until_ready(mod1(x))
    ref1 = jnp.reshape(x, (2, 4, 256))
    assert out1.shape == (2, 4, 256), out1.shape
    assert jnp.array_equal(out1, ref1), "mismatch vs jnp.reshape (case 1)"

    # Case 2: -1 resolution.
    mod2 = Reshape((-1, 128))
    out2 = jax.block_until_ready(mod2(x))
    ref2 = jnp.reshape(x, (-1, 128))
    assert out2.shape == (16, 128), out2.shape
    assert jnp.array_equal(out2, ref2), "mismatch vs jnp.reshape (case 2)"

    # Case 3: element count not a multiple of 8*128 (ragged, unaligned shape).
    y = jax.random.normal(k2, (3, 5, 7), dtype=jnp.float32)
    mod3 = Reshape((7, 15))
    out3 = jax.block_until_ready(mod3(y))
    ref3 = jnp.reshape(y, (7, 15))
    assert out3.shape == (7, 15), out3.shape
    assert jnp.array_equal(out3, ref3), "mismatch vs jnp.reshape (case 3)"

    # Case 4: sub-32-bit dtype (bf16) -- DMA path is dtype/layout agnostic.
    z = jax.random.normal(k3, (2, 8, 32), dtype=jnp.bfloat16)
    mod4 = Reshape((4, -1))
    out4 = jax.block_until_ready(mod4(z))
    ref4 = jnp.reshape(z, (4, -1))
    assert out4.shape == (4, 128), out4.shape
    assert jnp.array_equal(out4, ref4), "mismatch vs jnp.reshape (case 4)"

    print("KERNEL_OK")
</pallas_src>

<mosaic_0001>
module attributes {stable_mosaic.version = 11 : i64} {
  func.func @_dma_copy_kernel(%arg0: memref<2x4x16x16xf32, #tpu.memory_space<any>>, %arg1: memref<2x4x16x16xf32, #tpu.memory_space<any>>, %arg2: memref<!tpu.dma_semaphore, #tpu.memory_space<semaphore_mem>>) attributes {dimension_semantics = [], scalar_prefetch = 0 : i64, scratch_operands = 1 : i64, tpu.core_type = #tpu.core_type<tc>} {
    tpu.enqueue_dma source(%arg0 : memref<2x4x16x16xf32, #tpu.memory_space<any>>) target(%arg1 : memref<2x4x16x16xf32, #tpu.memory_space<any>>) target_semaphore(%arg2 : memref<!tpu.dma_semaphore, #tpu.memory_space<semaphore_mem>>)
    tpu.wait_dma2 semaphore(%arg2 : memref<!tpu.dma_semaphore, #tpu.memory_space<semaphore_mem>>) src(%arg0 : memref<2x4x16x16xf32, #tpu.memory_space<any>>) dst(%arg1 : memref<2x4x16x16xf32, #tpu.memory_space<any>>)
    return
  }
}

</mosaic_0001>

<llo_original>
// kernel: tpu_custom_call.1
$region0: #{tpu_custom_call.1}
  #allocation0 [shape = 'u32[]', space=smem, size = 0x4, offset = 0x4, fixed_abs, tag = 'smem constant byte address 0x4 - core index']
  #allocation1 [shape = 'u32[144,128]{1,0:T(1,128)}', space=vmem, size = 0x12000, scoped, tag = 'internal scratch']
  #allocation2 [shape = 's32[1]{0}', space=sflag, size = 0x4, scoped, tag = 'scratch operand']
  #allocation3 [shape = 's32[]', space=sflag, size = 0x4, offset = 0, fixed_abs, tag = 'sflag constant byte address 0x0 - dummy sync flag']
  #allocation4 [shape = 'u32[0]{0}', space=smem, size = 0, offset = 0, fixed_abs, tag = 'smem constant byte address 0x0 - null']
  %s0 = inlined_call_operand.hbm [shape: f32[2,4,16,16], index: 0, kind: input, shape index: {}]
  %s1 = inlined_call_operand.hbm [shape: f32[2,4,16,16], index: 1, kind: output, shape index: {}]
  %s2 = sld [smem:[#allocation0]]
  $region2: #{tpu_custom_call.1} parent=0
    _
  %s4 = ssub.s32 1, %s2
  %s5 = scalar_select 0, %s4, %s2
  %s7 = sshll.u32 1, 14
  %s8 = sxor.u32 4294967295, %s7
  %s11 = sshll.u32 3, 24
  %s12 = sxor.u32 4294967295, %s11
  %s13 = sand.u32 0, %s12
  %s15 = sor.u32 %s13, 0
  %18 = dma.general %s0, 2048, %s1, [#allocation2], [#allocation3], [#allocation4], %s15, 0
  %s19 = smul.u32 2, 4
  %s20 = smul.u32 %s19, 16
  %s21 = smul.u32 %s20, 1
  %s22 = sshll.u32 %s21, 4
  %23 = dma.done [#allocation2], %s22
  %24 = vsyncmov [#allocation2]
  %s25 = vpop.sfrf %24
  %p26 = scmp.eq.s32.totalorder %s25, 0
  %p27 = pneg %p26
  %29 = shalt.err (%p27)

</llo_original>
